<compile_context>
chip_gen: v7x
topology: tpu7x:2x2x1
jax: 0.10.0
libtpu: 0.0.40
codegen_flags: <defaults>
</compile_context>

<pallas_src>
import jax
import jax.numpy as jnp
from jax.experimental import pallas as pl
from jax.experimental.pallas import tpu as pltpu


def _round_up(x, m):
    return (x + m - 1) // m * m


def hierarchical_attention_kernel(ctxs_ref, hid_ref, wc_ref, wd_ref, bd_ref,
                                  wm_ref, att_ref, joint_ref):
    # ctxs_ref : (N, TB, D)  batch tile of the stacked contexts
    # hid_ref  : (TB, H)     batch tile of the decoder hidden state
    # wc_ref   : (N, D, M)   per-modality ctx projection weights (no bias)
    # wd_ref   : (H, M)      dec_proj weight
    # bd_ref   : (1, M)      dec_proj bias
    # wm_ref   : (1, M)      mlp weight (out_features = 1)
    # att_ref  : (TB, N)     softmax attention over modalities (f32)
    # joint_ref: (TB, D)     attention-weighted joint context
    n_mod = ctxs_ref.shape[0]

    # Decoder-state projection on the MXU with f32 accumulation.
    dec = (jnp.dot(hid_ref[...], wd_ref[...],
                   preferred_element_type=jnp.float32)
           + bd_ref[...].astype(jnp.float32))                       # (TB, M)
    wm = wm_ref[...].astype(jnp.float32)                            # (1, M)

    # Per-modality energies; only one (TB, M) intermediate live at a time.
    energies = []
    for n in range(n_mod):
        proj = jnp.dot(ctxs_ref[n], wc_ref[n],
                       preferred_element_type=jnp.float32)          # (TB, M)
        act = jnp.tanh(dec + proj)
        # VPU multiply + XLU lane reduce (deliberately NOT a width-1 matmul).
        energies.append(jnp.sum(act * wm, axis=-1, keepdims=True))  # (TB, 1)
    e = jnp.concatenate(energies, axis=-1)                          # (TB, N)

    # Numerically-stable softmax over the modality axis.
    m = jnp.max(e, axis=-1, keepdims=True)
    p = jnp.exp(e - m)
    s = jnp.sum(p, axis=-1, keepdims=True)
    inv = pl.reciprocal(s, approx=True)        # EUP slot
    inv = inv * (2.0 - s * inv)                # one Newton step -> ~f32 exact
    att = p * inv                                                    # (TB, N)
    att_ref[...] = att.astype(att_ref.dtype)

    # joint_context = sum_n att[:, n] * ctx_n   (f32 accumulate via promotion)
    joint = att[:, 0:1] * ctxs_ref[0]
    for n in range(1, n_mod):
        joint = joint + att[:, n:n + 1] * ctxs_ref[n]
    joint_ref[...] = joint.astype(joint_ref.dtype)


def hierarchical_attention(contexts, hid, wc, wd, bd, wm, *, block_b=256):
    """contexts: (N, B, D) stacked modality contexts (all ctx_dims equal);
    hid: (B, H); wc: (N, D, M); wd: (H, M); bd: (M,); wm: (M,).
    Returns (att_dist (N, B, 1) float32, joint_context (B, D))."""
    N, B, D = contexts.shape
    B_h, H = hid.shape
    assert B_h == B
    assert wc.shape[0] == N and wc.shape[1] == D
    M = wc.shape[2]
    assert wd.shape == (H, M) and bd.shape == (M,) and wm.shape == (M,)

    # Batch tile: multiple of 8 sublanes; pad B so the grid divides evenly.
    tb = min(block_b, _round_up(B, 8))
    tb = _round_up(tb, 8)
    b_pad = _round_up(B, tb)
    if b_pad != B:
        contexts = jnp.pad(contexts, ((0, 0), (0, b_pad - B), (0, 0)))
        hid = jnp.pad(hid, ((0, b_pad - B), (0, 0)))

    bd2 = bd.reshape(1, M)
    wm2 = wm.reshape(1, M)

    # Per-step VMEM estimate (double-buffered tiles + resident weights) used
    # to set an explicit scoped-VMEM limit; capped at 64 MiB (v7x-safe).
    c_isz = jnp.dtype(contexts.dtype).itemsize
    tile_bytes = 2 * (N * tb * D * c_isz
                      + tb * H * jnp.dtype(hid.dtype).itemsize
                      + tb * N * 4
                      + tb * D * c_isz)
    weight_bytes = (N * D * M + H * M + 2 * M) * jnp.dtype(wc.dtype).itemsize
    vmem_limit = int(min(max(2 * (tile_bytes + weight_bytes), 32 << 20),
                         64 << 20))

    grid = (b_pad // tb,)
    att_p, joint_p = pl.pallas_call(
        hierarchical_attention_kernel,
        out_shape=(
            jax.ShapeDtypeStruct((b_pad, N), jnp.float32),
            jax.ShapeDtypeStruct((b_pad, D), contexts.dtype),
        ),
        grid=grid,
        in_specs=[
            pl.BlockSpec((N, tb, D), lambda i: (0, i, 0)),   # contexts tile
            pl.BlockSpec((tb, H), lambda i: (i, 0)),         # hid tile
            pl.BlockSpec((N, D, M), lambda i: (0, 0, 0)),    # wc (resident)
            pl.BlockSpec((H, M), lambda i: (0, 0)),          # wd (resident)
            pl.BlockSpec((1, M), lambda i: (0, 0)),          # bd (resident)
            pl.BlockSpec((1, M), lambda i: (0, 0)),          # wm (resident)
        ],
        out_specs=(
            pl.BlockSpec((tb, N), lambda i: (i, 0)),         # att
            pl.BlockSpec((tb, D), lambda i: (i, 0)),         # joint
        ),
        compiler_params=pltpu.CompilerParams(
            dimension_semantics=("parallel",),
            vmem_limit_bytes=vmem_limit,
        ),
    )(contexts, hid, wc, wd, bd2, wm2)

    att = jnp.transpose(att_p[:B, :], (1, 0))[:, :, None]    # (N, B, 1)
    joint = joint_p[:B, :]                                    # (B, D)
    return att, joint


def _reference(contexts, hid, wc, wd, bd, wm):
    dec = hid @ wd + bd                                   # (B, M)
    proj = jnp.einsum('nbd,ndm->nbm', contexts, wc)       # (N, B, M)
    energies = jnp.tanh(dec[None] + proj) @ wm[:, None]   # (N, B, 1)
    att = jax.nn.softmax(energies, axis=0)
    joint = jnp.sum(att * contexts, axis=0)
    return att, joint


if __name__ == "__main__":
    # Small deterministic example consistent with the module:
    #   3 modalities, batch=2, ctx_dim=32, hid_dim=32, mid_dim=32.
    N, B, D, H, M = 3, 2, 32, 32, 32

    key = jax.random.PRNGKey(0)
    k_ctx, k_hid, k_wc, k_wd, k_bd, k_wm = jax.random.split(key, 6)

    contexts = jax.random.normal(k_ctx, (N, B, D), dtype=jnp.float32)
    hid = jax.random.normal(k_hid, (B, H), dtype=jnp.float32)

    # Deterministic synthetic parameters (no checkpoint loading).
    wc = 0.1 * jax.random.normal(k_wc, (N, D, M), dtype=jnp.float32)
    wd = 0.1 * jax.random.normal(k_wd, (H, M), dtype=jnp.float32)
    bd = 0.1 * jax.random.normal(k_bd, (M,), dtype=jnp.float32)
    wm = 0.1 * jax.random.normal(k_wm, (M,), dtype=jnp.float32)

    att, joint = hierarchical_attention(contexts, hid, wc, wd, bd, wm)
    jax.block_until_ready((att, joint))

    att_ref, joint_ref = _reference(contexts, hid, wc, wd, bd, wm)
    assert att.shape == (N, B, 1) and joint.shape == (B, D)
    # Slightly relaxed tolerance for the EUP approx-reciprocal (+ Newton
    # refinement) softmax denominator; structural bugs would be >> this.
    assert jnp.allclose(att, att_ref, atol=1e-4, rtol=1e-4)
    assert jnp.allclose(joint, joint_ref, atol=1e-4, rtol=1e-4)

    print("KERNEL_OK")
</pallas_src>

<mosaic_0001>
module attributes {stable_mosaic.version = 11 : i64} {
  func.func @hierarchical_attention_kernel(%arg0: i32, %arg1: memref<3x8x32xf32, #tpu.memory_space<vmem>>, %arg2: memref<8x32xf32, #tpu.memory_space<vmem>>, %arg3: memref<3x32x32xf32, #tpu.memory_space<vmem>>, %arg4: memref<32x32xf32, #tpu.memory_space<vmem>>, %arg5: memref<1x32xf32, #tpu.memory_space<vmem>>, %arg6: memref<1x32xf32, #tpu.memory_space<vmem>>, %arg7: memref<8x3xf32, #tpu.memory_space<vmem>>, %arg8: memref<8x32xf32, #tpu.memory_space<vmem>>) attributes {dimension_semantics = [#tpu.dimension_semantics<parallel>], iteration_bounds = array<i64: 1>, scalar_prefetch = 0 : i64, scratch_operands = 0 : i64, tpu.core_type = #tpu.core_type<tc>, window_params = [{transform_indices = @transform_0, window_bounds = array<i64: 3, 8, 32>}, {transform_indices = @transform_1, window_bounds = array<i64: 8, 32>}, {pipeline_mode = #tpu.pipeline_mode<synchronous>, transform_indices = @transform_2, window_bounds = array<i64: 3, 32, 32>}, {pipeline_mode = #tpu.pipeline_mode<synchronous>, transform_indices = @transform_3, window_bounds = array<i64: 32, 32>}, {pipeline_mode = #tpu.pipeline_mode<synchronous>, transform_indices = @transform_4, window_bounds = array<i64: 1, 32>}, {pipeline_mode = #tpu.pipeline_mode<synchronous>, transform_indices = @transform_5, window_bounds = array<i64: 1, 32>}, {transform_indices = @transform_6, window_bounds = array<i64: 8, 3>}, {transform_indices = @transform_7, window_bounds = array<i64: 8, 32>}]} {
    %c0 = arith.constant 0 : index
    %c0_0 = arith.constant 0 : index
    %0 = vector.load %arg2[%c0, %c0_0] : memref<8x32xf32, #tpu.memory_space<vmem>>, vector<8x32xf32>
    %c0_1 = arith.constant 0 : index
    %c0_2 = arith.constant 0 : index
    %1 = vector.load %arg4[%c0_1, %c0_2] : memref<32x32xf32, #tpu.memory_space<vmem>>, vector<32x32xf32>
    %cst = arith.constant dense<0.000000e+00> : vector<8x32xf32>
    %2 = tpu.matmul %0, %1, %cst {dimension_numbers = #tpu.dot_dimension_numbers<[1], [0], [0], [1], [0, 0, 1, 1], [], []>} : vector<8x32xf32>, vector<32x32xf32>, vector<8x32xf32> -> vector<8x32xf32>
    %c0_3 = arith.constant 0 : index
    %c0_4 = arith.constant 0 : index
    %3 = vector.load %arg5[%c0_3, %c0_4] : memref<1x32xf32, #tpu.memory_space<vmem>>, vector<1x32xf32>
    %4 = vector.broadcast %3 : vector<1x32xf32> to vector<8x32xf32>
    %5 = arith.addf %2, %4 : vector<8x32xf32>
    %c0_5 = arith.constant 0 : index
    %c0_6 = arith.constant 0 : index
    %6 = vector.load %arg6[%c0_5, %c0_6] : memref<1x32xf32, #tpu.memory_space<vmem>>, vector<1x32xf32>
    %c0_7 = arith.constant 0 : index
    %c0_8 = arith.constant 0 : index
    %c0_9 = arith.constant 0 : index
    %7 = vector.load %arg1[%c0_7, %c0_8, %c0_9] : memref<3x8x32xf32, #tpu.memory_space<vmem>>, vector<1x8x32xf32>
    %8 = vector.shape_cast %7 : vector<1x8x32xf32> to vector<8x32xf32>
    %c0_10 = arith.constant 0 : index
    %c0_11 = arith.constant 0 : index
    %c0_12 = arith.constant 0 : index
    %9 = vector.load %arg3[%c0_10, %c0_11, %c0_12] : memref<3x32x32xf32, #tpu.memory_space<vmem>>, vector<1x32x32xf32>
    %10 = vector.shape_cast %9 : vector<1x32x32xf32> to vector<32x32xf32>
    %cst_13 = arith.constant dense<0.000000e+00> : vector<8x32xf32>
    %11 = tpu.matmul %8, %10, %cst_13 {dimension_numbers = #tpu.dot_dimension_numbers<[1], [0], [0], [1], [0, 0, 1, 1], [], []>} : vector<8x32xf32>, vector<32x32xf32>, vector<8x32xf32> -> vector<8x32xf32>
    %12 = arith.addf %5, %11 : vector<8x32xf32>
    %13 = math.tanh %12 : vector<8x32xf32>
    %14 = vector.broadcast %6 : vector<1x32xf32> to vector<8x32xf32>
    %15 = arith.mulf %13, %14 : vector<8x32xf32>
    %cst_14 = arith.constant dense<0.000000e+00> : vector<8xf32>
    %16 = vector.multi_reduction <add>, %15, %cst_14 [1] : vector<8x32xf32> to vector<8xf32>
    %17 = vector.shape_cast %16 : vector<8xf32> to vector<8x1xf32>
    %c1 = arith.constant 1 : index
    %c0_15 = arith.constant 0 : index
    %c0_16 = arith.constant 0 : index
    %18 = vector.load %arg1[%c1, %c0_15, %c0_16] : memref<3x8x32xf32, #tpu.memory_space<vmem>>, vector<1x8x32xf32>
    %19 = vector.shape_cast %18 : vector<1x8x32xf32> to vector<8x32xf32>
    %c1_17 = arith.constant 1 : index
    %c0_18 = arith.constant 0 : index
    %c0_19 = arith.constant 0 : index
    %20 = vector.load %arg3[%c1_17, %c0_18, %c0_19] : memref<3x32x32xf32, #tpu.memory_space<vmem>>, vector<1x32x32xf32>
    %21 = vector.shape_cast %20 : vector<1x32x32xf32> to vector<32x32xf32>
    %cst_20 = arith.constant dense<0.000000e+00> : vector<8x32xf32>
    %22 = tpu.matmul %19, %21, %cst_20 {dimension_numbers = #tpu.dot_dimension_numbers<[1], [0], [0], [1], [0, 0, 1, 1], [], []>} : vector<8x32xf32>, vector<32x32xf32>, vector<8x32xf32> -> vector<8x32xf32>
    %23 = arith.addf %5, %22 : vector<8x32xf32>
    %24 = math.tanh %23 : vector<8x32xf32>
    %25 = vector.broadcast %6 : vector<1x32xf32> to vector<8x32xf32>
    %26 = arith.mulf %24, %25 : vector<8x32xf32>
    %cst_21 = arith.constant dense<0.000000e+00> : vector<8xf32>
    %27 = vector.multi_reduction <add>, %26, %cst_21 [1] : vector<8x32xf32> to vector<8xf32>
    %28 = vector.shape_cast %27 : vector<8xf32> to vector<8x1xf32>
    %c2 = arith.constant 2 : index
    %c0_22 = arith.constant 0 : index
    %c0_23 = arith.constant 0 : index
    %29 = vector.load %arg1[%c2, %c0_22, %c0_23] : memref<3x8x32xf32, #tpu.memory_space<vmem>>, vector<1x8x32xf32>
    %30 = vector.shape_cast %29 : vector<1x8x32xf32> to vector<8x32xf32>
    %c2_24 = arith.constant 2 : index
    %c0_25 = arith.constant 0 : index
    %c0_26 = arith.constant 0 : index
    %31 = vector.load %arg3[%c2_24, %c0_25, %c0_26] : memref<3x32x32xf32, #tpu.memory_space<vmem>>, vector<1x32x32xf32>
    %32 = vector.shape_cast %31 : vector<1x32x32xf32> to vector<32x32xf32>
    %cst_27 = arith.constant dense<0.000000e+00> : vector<8x32xf32>
    %33 = tpu.matmul %30, %32, %cst_27 {dimension_numbers = #tpu.dot_dimension_numbers<[1], [0], [0], [1], [0, 0, 1, 1], [], []>} : vector<8x32xf32>, vector<32x32xf32>, vector<8x32xf32> -> vector<8x32xf32>
    %34 = arith.addf %5, %33 : vector<8x32xf32>
    %35 = math.tanh %34 : vector<8x32xf32>
    %36 = vector.broadcast %6 : vector<1x32xf32> to vector<8x32xf32>
    %37 = arith.mulf %35, %36 : vector<8x32xf32>
    %cst_28 = arith.constant dense<0.000000e+00> : vector<8xf32>
    %38 = vector.multi_reduction <add>, %37, %cst_28 [1] : vector<8x32xf32> to vector<8xf32>
    %39 = vector.shape_cast %38 : vector<8xf32> to vector<8x1xf32>
    %40 = tpu.concatenate %17, %28, %39 in 1 : vector<8x1xf32>, vector<8x1xf32>, vector<8x1xf32> -> vector<8x3xf32>
    %cst_29 = arith.constant dense<0xFF800000> : vector<8xf32>
    %41 = vector.multi_reduction <maximumf>, %40, %cst_29 [1] : vector<8x3xf32> to vector<8xf32>
    %42 = vector.shape_cast %41 : vector<8xf32> to vector<8x1xf32>
    %43 = vector.broadcast %42 : vector<8x1xf32> to vector<8x3xf32>
    %44 = arith.subf %40, %43 : vector<8x3xf32>
    %45 = math.exp %44 : vector<8x3xf32>
    %cst_30 = arith.constant dense<0.000000e+00> : vector<8xf32>
    %46 = vector.multi_reduction <add>, %45, %cst_30 [1] : vector<8x3xf32> to vector<8xf32>
    %47 = vector.shape_cast %46 : vector<8xf32> to vector<8x1xf32>
    %48 = tpu.reciprocal %47 {approx = true} : vector<8x1xf32> -> vector<8x1xf32>
    %49 = arith.mulf %47, %48 : vector<8x1xf32>
    %cst_31 = arith.constant 2.000000e+00 : f32
    %50 = vector.broadcast %cst_31 : f32 to vector<8x1xf32>
    %51 = arith.subf %50, %49 : vector<8x1xf32>
    %52 = arith.mulf %48, %51 : vector<8x1xf32>
    %53 = vector.broadcast %52 : vector<8x1xf32> to vector<8x3xf32>
    %54 = arith.mulf %45, %53 : vector<8x3xf32>
    %c0_32 = arith.constant 0 : index
    %c0_33 = arith.constant 0 : index
    %55 = vector.load %arg7[%c0_32, %c0_33] : memref<8x3xf32, #tpu.memory_space<vmem>>, vector<8x3xf32>
    tpu.vector_store %arg7[%c0_32, %c0_33], %54 {strides = array<i32>} : memref<8x3xf32, #tpu.memory_space<vmem>>, vector<8x3xf32>,
    %56 = vector.extract_strided_slice %54 {offsets = [0, 0], sizes = [8, 1], strides = [1, 1]} : vector<8x3xf32> to vector<8x1xf32>
    %c0_34 = arith.constant 0 : index
    %c0_35 = arith.constant 0 : index
    %c0_36 = arith.constant 0 : index
    %57 = vector.load %arg1[%c0_34, %c0_35, %c0_36] : memref<3x8x32xf32, #tpu.memory_space<vmem>>, vector<1x8x32xf32>
    %58 = vector.shape_cast %57 : vector<1x8x32xf32> to vector<8x32xf32>
    %59 = vector.broadcast %56 : vector<8x1xf32> to vector<8x32xf32>
    %60 = arith.mulf %59, %58 : vector<8x32xf32>
    %61 = vector.extract_strided_slice %54 {offsets = [0, 1], sizes = [8, 1], strides = [1, 1]} : vector<8x3xf32> to vector<8x1xf32>
    %c1_37 = arith.constant 1 : index
    %c0_38 = arith.constant 0 : index
    %c0_39 = arith.constant 0 : index
    %62 = vector.load %arg1[%c1_37, %c0_38, %c0_39] : memref<3x8x32xf32, #tpu.memory_space<vmem>>, vector<1x8x32xf32>
    %63 = vector.shape_cast %62 : vector<1x8x32xf32> to vector<8x32xf32>
    %64 = vector.broadcast %61 : vector<8x1xf32> to vector<8x32xf32>
    %65 = arith.mulf %64, %63 : vector<8x32xf32>
    %66 = arith.addf %60, %65 : vector<8x32xf32>
    %67 = vector.extract_strided_slice %54 {offsets = [0, 2], sizes = [8, 1], strides = [1, 1]} : vector<8x3xf32> to vector<8x1xf32>
    %c2_40 = arith.constant 2 : index
    %c0_41 = arith.constant 0 : index
    %c0_42 = arith.constant 0 : index
    %68 = vector.load %arg1[%c2_40, %c0_41, %c0_42] : memref<3x8x32xf32, #tpu.memory_space<vmem>>, vector<1x8x32xf32>
    %69 = vector.shape_cast %68 : vector<1x8x32xf32> to vector<8x32xf32>
    %70 = vector.broadcast %67 : vector<8x1xf32> to vector<8x32xf32>
    %71 = arith.mulf %70, %69 : vector<8x32xf32>
    %72 = arith.addf %66, %71 : vector<8x32xf32>
    %c0_43 = arith.constant 0 : index
    %c0_44 = arith.constant 0 : index
    %73 = vector.load %arg8[%c0_43, %c0_44] : memref<8x32xf32, #tpu.memory_space<vmem>>, vector<8x32xf32>
    tpu.vector_store %arg8[%c0_43, %c0_44], %72 {strides = array<i32>} : memref<8x32xf32, #tpu.memory_space<vmem>>, vector<8x32xf32>,
    return
  }
  func.func @transform_0(%arg0: i32) -> (i32, i32, i32) {
    %c0_i32 = arith.constant 0 : i32
    %c0_i32_0 = arith.constant 0 : i32
    %c0_i32_1 = arith.constant 0 : i32
    return %c0_i32, %arg0, %c0_i32_0 : i32, i32, i32
  }
  func.func @transform_1(%arg0: i32) -> (i32, i32) {
    %c0_i32 = arith.constant 0 : i32
    %c0_i32_0 = arith.constant 0 : i32
    return %arg0, %c0_i32 : i32, i32
  }
  func.func @transform_2(%arg0: i32) -> (i32, i32, i32) {
    %c0_i32 = arith.constant 0 : i32
    %c0_i32_0 = arith.constant 0 : i32
    %c0_i32_1 = arith.constant 0 : i32
    %c0_i32_2 = arith.constant 0 : i32
    return %c0_i32, %c0_i32_0, %c0_i32_1 : i32, i32, i32
  }
  func.func @transform_3(%arg0: i32) -> (i32, i32) {
    %c0_i32 = arith.constant 0 : i32
    %c0_i32_0 = arith.constant 0 : i32
    %c0_i32_1 = arith.constant 0 : i32
    return %c0_i32, %c0_i32_0 : i32, i32
  }
  func.func @transform_4(%arg0: i32) -> (i32, i32) {
    %c0_i32 = arith.constant 0 : i32
    %c0_i32_0 = arith.constant 0 : i32
    %c0_i32_1 = arith.constant 0 : i32
    return %c0_i32, %c0_i32_0 : i32, i32
  }
  func.func @transform_5(%arg0: i32) -> (i32, i32) {
    %c0_i32 = arith.constant 0 : i32
    %c0_i32_0 = arith.constant 0 : i32
    %c0_i32_1 = arith.constant 0 : i32
    return %c0_i32, %c0_i32_0 : i32, i32
  }
  func.func @transform_6(%arg0: i32) -> (i32, i32) {
    %c0_i32 = arith.constant 0 : i32
    %c0_i32_0 = arith.constant 0 : i32
    return %arg0, %c0_i32 : i32, i32
  }
  func.func @transform_7(%arg0: i32) -> (i32, i32) {
    %c0_i32 = arith.constant 0 : i32
    %c0_i32_0 = arith.constant 0 : i32
    return %arg0, %c0_i32 : i32, i32
  }
}

</mosaic_0001>

<llo_original>
// kernel: tpu_custom_call.1
$region0: #{tpu_custom_call.1}
  #allocation0 [shape = 'u32[]', space=smem, size = 0x4, offset = 0x4, fixed_abs, tag = 'smem constant byte address 0x4 - core index']
  #allocation1 [shape = 'u32[144,128]{1,0:T(1,128)}', space=vmem, size = 0x12000, scoped, tag = 'internal scratch']
  %s0 = inlined_call_operand.hbm [shape: f32[3,8,32], index: 0, kind: input, shape index: {}]
  %s1 = inlined_call_operand.hbm [shape: f32[8,32], index: 1, kind: input, shape index: {}]
  %s2 = inlined_call_operand.hbm [shape: f32[3,32,32], index: 2, kind: input, shape index: {}]
  %s3 = inlined_call_operand.hbm [shape: f32[32,32], index: 3, kind: input, shape index: {}]
  %s4 = inlined_call_operand.vmem [shape: f32[1,32], index: 4, kind: input, shape index: {}]
  %s5 = inlined_call_operand.vmem [shape: f32[1,32], index: 5, kind: input, shape index: {}]
  %s6 = inlined_call_operand.vmem [shape: f32[8,3], index: 6, kind: output, shape index: {0}]
  %s7 = inlined_call_operand.hbm [shape: f32[8,32], index: 7, kind: output, shape index: {1}]
  %8 = xla_tuple %s6, %s7
  %s9 = sld [smem:[#allocation0]]
  $region58: #{tpu_custom_call.1} parent=0
    _
  %s11 = ssub.s32 1, %s9
  %s12 = scalar_select 0, %s11, %s9
  $region1: #{tpu_custom_call.1} parent=0
    #allocation2 [shape = 'u8[12288]{0}', space=vmem, size = 0x3000, scoped, tag = 'input window, operand 0, single buffered']
    #allocation3 [shape = 's32[1]{0}', space=sflag, size = 0x4, scoped, tag = 'scoped memory for tpu_custom_call.1']
    #allocation4 [shape = 's32[1]{0}', space=sflag, size = 0x4, scoped, tag = 'scoped memory for tpu_custom_call.1']
    #allocation5 [shape = 'u8[4096]{0}', space=vmem, size = 0x1000, scoped, tag = 'input window, operand 1, single buffered']
    #allocation6 [shape = 's32[1]{0}', space=sflag, size = 0x4, scoped, tag = 'scoped memory for tpu_custom_call.1']
    #allocation7 [shape = 'u8[49152]{0}', space=vmem, size = 0xc000, scoped, tag = 'input window, operand 2, single buffered']
    #allocation8 [shape = 'u8[16384]{0}', space=vmem, size = 0x4000, scoped, tag = 'input window, operand 3, single buffered']
    #allocation9 [shape = 's32[1]{0}', space=sflag, size = 0x4, scoped, tag = 'scoped memory for tpu_custom_call.1']
    #allocation10 [shape = 'u8[4096]{0}', space=vmem, size = 0x1000, scoped, tag = 'output window, operand 1, single buffered']
    %13 = vsyncpa [#allocation3], 0
    %14 = vsyncpa [#allocation6], 0
    %15 = vsyncpa [#allocation9], 0
    %16 = vsyncpa [#allocation4], 0
    // Predicated region
    $region2: #{tpu_custom_call.1} parent=1 // pred_check
      _
    $region3: #{tpu_custom_call.1} parent=1 // pred_check_branch
      %18 = sbr.rel (0) target = $region5
    $region4: #{tpu_custom_call.1} parent=1 // pred_region
      %s20 = ssub.s32 384, 384
      %21 = vsyncadd [#allocation3], %s20
      %s22 = sshll.u32 [#allocation2], 4
      %s23 = int_to_ptr.vmem [resolvable:$true] %s22
      %28 = dma.hbm_to_vmem [thread:$0]  %s0, 384, %s23, [#allocation3], 128, 128, 8
    $region5: #{tpu_custom_call.1} parent=1 // pred_fallthru
      _
    // Predicated region
    $region6: #{tpu_custom_call.1} parent=1 // pred_check
      _
    $region7: #{tpu_custom_call.1} parent=1 // pred_check_branch
      %30 = sbr.rel (0) target = $region9
    $region8: #{tpu_custom_call.1} parent=1 // pred_region
      %s32 = ssub.s32 128, 128
      %33 = vsyncadd [#allocation6], %s32
      %s35 = sshll.u32 [#allocation5], 4
      %s36 = int_to_ptr.vmem [resolvable:$true] %s35
      %38 = dma.hbm_to_vmem [thread:$0]  %s1, 128, %s36, [#allocation6]
    $region9: #{tpu_custom_call.1} parent=1 // pred_fallthru
      _
    // Predicated region
    $region10: #{tpu_custom_call.1} parent=1 // pred_check
      _
    $region11: #{tpu_custom_call.1} parent=1 // pred_check_branch
      %40 = sbr.rel (0) target = $region13
    $region12: #{tpu_custom_call.1} parent=1 // pred_region
      %s42 = ssub.s32 1536, 1536
      %43 = vsyncadd [#allocation6], %s42
      %s44 = sshll.u32 [#allocation7], 4
      %s45 = int_to_ptr.vmem [resolvable:$true] %s44
      %50 = dma.hbm_to_vmem [thread:$0]  %s2, 1536, %s45, [#allocation6], 128, 128, 8
    $region13: #{tpu_custom_call.1} parent=1 // pred_fallthru
      _
    // Predicated region
    $region14: #{tpu_custom_call.1} parent=1 // pred_check
      _
    $region15: #{tpu_custom_call.1} parent=1 // pred_check_branch
      %52 = sbr.rel (0) target = $region17
    $region16: #{tpu_custom_call.1} parent=1 // pred_region
      %s54 = ssub.s32 512, 512
      %55 = vsyncadd [#allocation9], %s54
      %s56 = sshll.u32 [#allocation8], 4
      %s57 = int_to_ptr.vmem [resolvable:$true] %s56
      %62 = dma.hbm_to_vmem [thread:$0]  %s3, 512, %s57, [#allocation9], 128, 128, 8
    $region17: #{tpu_custom_call.1} parent=1 // pred_fallthru
      _
    // Predicated region
    $region18: #{tpu_custom_call.1} parent=1 // pred_check
      _
    $region19: #{tpu_custom_call.1} parent=1 // pred_check_branch
      %64 = sbr.rel (0) target = $region21
    $region20: #{tpu_custom_call.1} parent=1 // pred_region
      _
    $region21: #{tpu_custom_call.1} parent=1 // pred_fallthru
      _
    // Predicated region
    $region22: #{tpu_custom_call.1} parent=1 // pred_check
      _
    $region23: #{tpu_custom_call.1} parent=1 // pred_check_branch
      %66 = sbr.rel (0) target = $region25
    $region24: #{tpu_custom_call.1} parent=1 // pred_region
      _
    $region25: #{tpu_custom_call.1} parent=1 // pred_fallthru
      _
    // Predicated region
    $region26: #{tpu_custom_call.1} parent=1 // pred_check
      _
    $region27: #{tpu_custom_call.1} parent=1 // pred_check_branch
      %68 = sbr.rel (0) target = $region29
    $region28: #{tpu_custom_call.1} parent=1 // pred_region
      %69 = dma.done [#allocation3], 384
    $region29: #{tpu_custom_call.1} parent=1 // pred_fallthru
      _
    // Predicated region
    $region30: #{tpu_custom_call.1} parent=1 // pred_check
      _
    $region31: #{tpu_custom_call.1} parent=1 // pred_check_branch
      %71 = sbr.rel (0) target = $region33
    $region32: #{tpu_custom_call.1} parent=1 // pred_region
      %72 = dma.done [#allocation6], 128
    $region33: #{tpu_custom_call.1} parent=1 // pred_fallthru
      _
    // Predicated region
    $region34: #{tpu_custom_call.1} parent=1 // pred_check
      _
    $region35: #{tpu_custom_call.1} parent=1 // pred_check_branch
      %74 = sbr.rel (0) target = $region37
    $region36: #{tpu_custom_call.1} parent=1 // pred_region
      %75 = dma.done [#allocation6], 1536
    $region37: #{tpu_custom_call.1} parent=1 // pred_fallthru
      _
    // Predicated region
    $region38: #{tpu_custom_call.1} parent=1 // pred_check
      _
    $region39: #{tpu_custom_call.1} parent=1 // pred_check_branch
      %77 = sbr.rel (0) target = $region41
    $region40: #{tpu_custom_call.1} parent=1 // pred_region
      %78 = dma.done [#allocation9], 512
    $region41: #{tpu_custom_call.1} parent=1 // pred_fallthru
      _
    %v79 = vld [vmem:[#allocation5] sm:$0xff]
    %v80 = vld [vmem:[#allocation8] sm:$0xff]
    %v81 = vld [vmem:[#allocation8 + $0x8] sm:$0xff]
    %v82 = vld [vmem:[#allocation8 + $0x10] sm:$0xff]
    %v83 = vld [vmem:[#allocation8 + $0x18] sm:$0xff]
    %v84 = vld [vmem:[%s4] sm:$0x1]
    %v86 = vlaneseq
    %v87 = vshrl.u32 %v86, 7
    %v88 = vsub.s32 0, %v87
    %v89 = vrot.slane %v84, %v88
    %vm91 = vcmask 261120
    %v93 = vsel %vm91, %v79, 0
    %95 = vmatprep.subr.mxu0 0.0
    %96 = vmatpush1.msra.mxu0 %v80
    %97 = vmatprep.subr.mxu0 0.0
    %98 = vmatpush1.msra.mxu0 %v81
    %99 = vmatprep.subr.mxu0 0.0
    %100 = vmatpush1.msra.mxu0 %v82
    %101 = vmatprep.subr.mxu0 0.0
    %102 = vmatpush1.msra.mxu0 %v83
    %103 = vmatprep.subr.mxu0 0.0
    %104 = vmatpush1.msra.mxu0 0.0
    %105 = vmatprep.subr.mxu0 0.0
    %106 = vmatpush1.msra.mxu0 0.0
    %107 = vmatprep.subr.mxu0 0.0
    %108 = vmatpush1.msra.mxu0 0.0
    %109 = vmatprep.subr.mxu0 0.0
    %110 = vmatpush1.msra.mxu0 0.0
    %111 = vmatprep.subr.mxu0 0.0
    %112 = vmatpush1.msra.mxu0 0.0
    %113 = vmatprep.subr.mxu0 0.0
    %114 = vmatpush1.msra.mxu0 0.0
    %115 = vmatprep.subr.mxu0 0.0
    %116 = vmatpush1.msra.mxu0 0.0
    %117 = vmatprep.subr.mxu0 0.0
    %118 = vmatpush1.msra.mxu0 0.0
    %119 = vmatprep.subr.mxu0 0.0
    %120 = vmatpush1.msra.mxu0 0.0
    %121 = vmatprep.subr.mxu0 0.0
    %122 = vmatpush1.msra.mxu0 0.0
    %123 = vmatprep.subr.mxu0 0.0
    %124 = vmatpush1.msra.mxu0 0.0
    %125 = vmatprep.subr.mxu0 0.0
    %126 = vmatpush1.msra.mxu0 0.0
    %127 = vmatprep.subr.mxu0 0.0
    %128 = vmatpush1.msra.mxu0 0.0
    %129 = vmatprep.subr.mxu0 0.0
    %130 = vmatpush1.msra.mxu0 0.0
    %131 = vmatprep.subr.mxu0 0.0
    %132 = vmatpush1.msra.mxu0 0.0
    %133 = vmatprep.subr.mxu0 0.0
    %134 = vmatpush1.msra.mxu0 0.0
    %135 = vmatprep.subr.mxu0 0.0
    %136 = vmatpush1.msra.mxu0 0.0
    %137 = vmatprep.subr.mxu0 0.0
    %138 = vmatpush1.msra.mxu0 0.0
    %139 = vmatprep.subr.mxu0 0.0
    %140 = vmatpush1.msra.mxu0 0.0
    %141 = vmatprep.subr.mxu0 0.0
    %142 = vmatpush1.msra.mxu0 0.0
    %143 = vmatprep.subr.mxu0 0.0
    %144 = vmatpush1.msra.mxu0 0.0
    %145 = vmatprep.subr.mxu0 0.0
    %146 = vmatpush1.msra.mxu0 0.0
    %147 = vmatprep.subr.mxu0 0.0
    %148 = vmatpush1.msra.mxu0 0.0
    %149 = vmatprep.subr.mxu0 0.0
    %150 = vmatpush1.msra.mxu0 0.0
    %151 = vmatprep.subr.mxu0 0.0
    %152 = vmatpush1.msra.mxu0 0.0
    %153 = vmatprep.subr.mxu0 0.0
    %154 = vmatpush1.msra.mxu0 0.0
    %155 = vmatprep.subr.mxu0 0.0
    %156 = vmatpush1.msra.mxu0 0.0
    %157 = vmatprep.subr.mxu0 0.0
    %158 = vmatpush1.msra.mxu0 0.0
    %159 = vmatprep.mubr.f32.mxu0 0.0
    %160 = vmatmul.mubr.f32.gmra.mrb[0].mxu0 %v93
    %v161 = vpop.f32.mrb[0].mxu0
    %v162 = vadd.f32 %v89, %v161
    %v163 = vpop.f32.mrb[0].mxu0
    %164 = vdwg.mxu0
    %v165 = vld [vmem:[%s5] sm:$0x1]
    %v166 = vld [vmem:[#allocation2] sm:$0xff]
    %v167 = vld [vmem:[#allocation7] sm:$0xff]
    %v168 = vld [vmem:[#allocation7 + $0x8] sm:$0xff]
    %v169 = vld [vmem:[#allocation7 + $0x10] sm:$0xff]
    %v170 = vld [vmem:[#allocation7 + $0x18] sm:$0xff]
    %v172 = vsel %vm91, %v166, 0
    %174 = vmatprep.subr.mxu0 0.0
    %175 = vmatpush1.msra.mxu0 %v167
    %176 = vmatprep.subr.mxu0 0.0
    %177 = vmatpush1.msra.mxu0 %v168
    %178 = vmatprep.subr.mxu0 0.0
    %179 = vmatpush1.msra.mxu0 %v169
    %180 = vmatprep.subr.mxu0 0.0
    %181 = vmatpush1.msra.mxu0 %v170
    %182 = vmatprep.subr.mxu0 0.0
    %183 = vmatpush1.msra.mxu0 0.0
    %184 = vmatprep.subr.mxu0 0.0
    %185 = vmatpush1.msra.mxu0 0.0
    %186 = vmatprep.subr.mxu0 0.0
    %187 = vmatpush1.msra.mxu0 0.0
    %188 = vmatprep.subr.mxu0 0.0
    %189 = vmatpush1.msra.mxu0 0.0
    %190 = vmatprep.subr.mxu0 0.0
    %191 = vmatpush1.msra.mxu0 0.0
    %192 = vmatprep.subr.mxu0 0.0
    %193 = vmatpush1.msra.mxu0 0.0
    %194 = vmatprep.subr.mxu0 0.0
    %195 = vmatpush1.msra.mxu0 0.0
    %196 = vmatprep.subr.mxu0 0.0
    %197 = vmatpush1.msra.mxu0 0.0
    %198 = vmatprep.subr.mxu0 0.0
    %199 = vmatpush1.msra.mxu0 0.0
    %200 = vmatprep.subr.mxu0 0.0
    %201 = vmatpush1.msra.mxu0 0.0
    %202 = vmatprep.subr.mxu0 0.0
    %203 = vmatpush1.msra.mxu0 0.0
    %204 = vmatprep.subr.mxu0 0.0
    %205 = vmatpush1.msra.mxu0 0.0
    %206 = vmatprep.subr.mxu0 0.0
    %207 = vmatpush1.msra.mxu0 0.0
    %208 = vmatprep.subr.mxu0 0.0
    %209 = vmatpush1.msra.mxu0 0.0
    %210 = vmatprep.subr.mxu0 0.0
    %211 = vmatpush1.msra.mxu0 0.0
    %212 = vmatprep.subr.mxu0 0.0
    %213 = vmatpush1.msra.mxu0 0.0
    %214 = vmatprep.subr.mxu0 0.0
    %215 = vmatpush1.msra.mxu0 0.0
    %216 = vmatprep.subr.mxu0 0.0
    %217 = vmatpush1.msra.mxu0 0.0
    %218 = vmatprep.subr.mxu0 0.0
    %219 = vmatpush1.msra.mxu0 0.0
    %220 = vmatprep.subr.mxu0 0.0
    %221 = vmatpush1.msra.mxu0 0.0
    %222 = vmatprep.subr.mxu0 0.0
    %223 = vmatpush1.msra.mxu0 0.0
    %224 = vmatprep.subr.mxu0 0.0
    %225 = vmatpush1.msra.mxu0 0.0
    %226 = vmatprep.subr.mxu0 0.0
    %227 = vmatpush1.msra.mxu0 0.0
    %228 = vmatprep.subr.mxu0 0.0
    %229 = vmatpush1.msra.mxu0 0.0
    %230 = vmatprep.subr.mxu0 0.0
    %231 = vmatpush1.msra.mxu0 0.0
    %232 = vmatprep.subr.mxu0 0.0
    %233 = vmatpush1.msra.mxu0 0.0
    %234 = vmatprep.subr.mxu0 0.0
    %235 = vmatpush1.msra.mxu0 0.0
    %236 = vmatprep.subr.mxu0 0.0
    %237 = vmatpush1.msra.mxu0 0.0
    %238 = vmatprep.mubr.f32.mxu0 0.0
    %239 = vmatmul.mubr.f32.gmra.mrb[0].mxu0 %v172
    %v240 = vpop.f32.mrb[0].mxu0
    %v241 = vadd.f32 0.0, %v240
    %v242 = vpop.f32.mrb[0].mxu0
    %243 = vdwg.mxu0
    %v244 = vadd.f32 %v162, %v241
    %v245 = vtanh.pop %v244
    %v247 = vlaneseq
    %v248 = vshrl.u32 %v247, 7
    %v249 = vsub.s32 0, %v248
    %v250 = vrot.slane %v165, %v249
    %v252 = vmul.f32 %v245, %v250
    %v253 = vsel %vm91, %v252, 0.0
    %254 = vadd.xlane.f32.xlu0 %v253
    %v255 = vpop.xlane.xlu0 %254
    %s256 = scalar_lea.vmem [#allocation2], 8
    %v257 = vld [vmem:[%s256] sm:$0xff]
    %s258 = scalar_lea.vmem [#allocation7], 32
    %v259 = vld [vmem:[%s258] sm:$0xff]
    %v260 = vld [vmem:[%s258 + $0x8] sm:$0xff]
    %v261 = vld [vmem:[%s258 + $0x10] sm:$0xff]
    %v262 = vld [vmem:[%s258 + $0x18] sm:$0xff]
    %v264 = vsel %vm91, %v257, 0
    %266 = vmatprep.subr.mxu0 0.0
    %267 = vmatpush1.msra.mxu0 %v259
    %268 = vmatprep.subr.mxu0 0.0
    %269 = vmatpush1.msra.mxu0 %v260
    %270 = vmatprep.subr.mxu0 0.0
    %271 = vmatpush1.msra.mxu0 %v261
    %272 = vmatprep.subr.mxu0 0.0
    %273 = vmatpush1.msra.mxu0 %v262
    %274 = vmatprep.subr.mxu0 0.0
    %275 = vmatpush1.msra.mxu0 0.0
    %276 = vmatprep.subr.mxu0 0.0
    %277 = vmatpush1.msra.mxu0 0.0
    %278 = vmatprep.subr.mxu0 0.0
    %279 = vmatpush1.msra.mxu0 0.0
    %280 = vmatprep.subr.mxu0 0.0
    %281 = vmatpush1.msra.mxu0 0.0
    %282 = vmatprep.subr.mxu0 0.0
    %283 = vmatpush1.msra.mxu0 0.0
    %284 = vmatprep.subr.mxu0 0.0
    %285 = vmatpush1.msra.mxu0 0.0
    %286 = vmatprep.subr.mxu0 0.0
    %287 = vmatpush1.msra.mxu0 0.0
    %288 = vmatprep.subr.mxu0 0.0
    %289 = vmatpush1.msra.mxu0 0.0
    %290 = vmatprep.subr.mxu0 0.0
    %291 = vmatpush1.msra.mxu0 0.0
    %292 = vmatprep.subr.mxu0 0.0
    %293 = vmatpush1.msra.mxu0 0.0
    %294 = vmatprep.subr.mxu0 0.0
    %295 = vmatpush1.msra.mxu0 0.0
    %296 = vmatprep.subr.mxu0 0.0
    %297 = vmatpush1.msra.mxu0 0.0
    %298 = vmatprep.subr.mxu0 0.0
    %299 = vmatpush1.msra.mxu0 0.0
    %300 = vmatprep.subr.mxu0 0.0
    %301 = vmatpush1.msra.mxu0 0.0
    %302 = vmatprep.subr.mxu0 0.0
    %303 = vmatpush1.msra.mxu0 0.0
    %304 = vmatprep.subr.mxu0 0.0
    %305 = vmatpush1.msra.mxu0 0.0
    %306 = vmatprep.subr.mxu0 0.0
    %307 = vmatpush1.msra.mxu0 0.0
    %308 = vmatprep.subr.mxu0 0.0
    %309 = vmatpush1.msra.mxu0 0.0
    %310 = vmatprep.subr.mxu0 0.0
    %311 = vmatpush1.msra.mxu0 0.0
    %312 = vmatprep.subr.mxu0 0.0
    %313 = vmatpush1.msra.mxu0 0.0
    %314 = vmatprep.subr.mxu0 0.0
    %315 = vmatpush1.msra.mxu0 0.0
    %316 = vmatprep.subr.mxu0 0.0
    %317 = vmatpush1.msra.mxu0 0.0
    %318 = vmatprep.subr.mxu0 0.0
    %319 = vmatpush1.msra.mxu0 0.0
    %320 = vmatprep.subr.mxu0 0.0
    %321 = vmatpush1.msra.mxu0 0.0
    %322 = vmatprep.subr.mxu0 0.0
    %323 = vmatpush1.msra.mxu0 0.0
    %324 = vmatprep.subr.mxu0 0.0
    %325 = vmatpush1.msra.mxu0 0.0
    %326 = vmatprep.subr.mxu0 0.0
    %327 = vmatpush1.msra.mxu0 0.0
    %328 = vmatprep.subr.mxu0 0.0
    %329 = vmatpush1.msra.mxu0 0.0
    %330 = vmatprep.mubr.f32.mxu0 0.0
    %331 = vmatmul.mubr.f32.gmra.mrb[0].mxu0 %v264
    %v332 = vpop.f32.mrb[0].mxu0
    %v333 = vadd.f32 0.0, %v332
    %v334 = vpop.f32.mrb[0].mxu0
    %335 = vdwg.mxu0
    %v336 = vadd.f32 %v162, %v333
    %v337 = vtanh.pop %v336
    %v338 = vmul.f32 %v337, %v250
    %v339 = vsel %vm91, %v338, 0.0
    %340 = vadd.xlane.f32.xlu0 %v339
    %v341 = vpop.xlane.xlu0 %340
    %s342 = scalar_lea.vmem [#allocation2], 16
    %v343 = vld [vmem:[%s342] sm:$0xff]
    %s344 = scalar_lea.vmem [#allocation7], 64
    %v345 = vld [vmem:[%s344] sm:$0xff]
    %v346 = vld [vmem:[%s344 + $0x8] sm:$0xff]
    %v347 = vld [vmem:[%s344 + $0x10] sm:$0xff]
    %v348 = vld [vmem:[%s344 + $0x18] sm:$0xff]
    %v350 = vsel %vm91, %v343, 0
    %352 = vmatprep.subr.mxu0 0.0
    %353 = vmatpush1.msra.mxu0 %v345
    %354 = vmatprep.subr.mxu0 0.0
    %355 = vmatpush1.msra.mxu0 %v346
    %356 = vmatprep.subr.mxu0 0.0
    %357 = vmatpush1.msra.mxu0 %v347
    %358 = vmatprep.subr.mxu0 0.0
    %359 = vmatpush1.msra.mxu0 %v348
    %360 = vmatprep.subr.mxu0 0.0
    %361 = vmatpush1.msra.mxu0 0.0
    %362 = vmatprep.subr.mxu0 0.0
    %363 = vmatpush1.msra.mxu0 0.0
    %364 = vmatprep.subr.mxu0 0.0
    %365 = vmatpush1.msra.mxu0 0.0
    %366 = vmatprep.subr.mxu0 0.0
    %367 = vmatpush1.msra.mxu0 0.0
    %368 = vmatprep.subr.mxu0 0.0
    %369 = vmatpush1.msra.mxu0 0.0
    %370 = vmatprep.subr.mxu0 0.0
    %371 = vmatpush1.msra.mxu0 0.0
    %372 = vmatprep.subr.mxu0 0.0
    %373 = vmatpush1.msra.mxu0 0.0
    %374 = vmatprep.subr.mxu0 0.0
    %375 = vmatpush1.msra.mxu0 0.0
    %376 = vmatprep.subr.mxu0 0.0
    %377 = vmatpush1.msra.mxu0 0.0
    %378 = vmatprep.subr.mxu0 0.0
    %379 = vmatpush1.msra.mxu0 0.0
    %380 = vmatprep.subr.mxu0 0.0
    %381 = vmatpush1.msra.mxu0 0.0
    %382 = vmatprep.subr.mxu0 0.0
    %383 = vmatpush1.msra.mxu0 0.0
    %384 = vmatprep.subr.mxu0 0.0
    %385 = vmatpush1.msra.mxu0 0.0
    %386 = vmatprep.subr.mxu0 0.0
    %387 = vmatpush1.msra.mxu0 0.0
    %388 = vmatprep.subr.mxu0 0.0
    %389 = vmatpush1.msra.mxu0 0.0
    %390 = vmatprep.subr.mxu0 0.0
    %391 = vmatpush1.msra.mxu0 0.0
    %392 = vmatprep.subr.mxu0 0.0
    %393 = vmatpush1.msra.mxu0 0.0
    %394 = vmatprep.subr.mxu0 0.0
    %395 = vmatpush1.msra.mxu0 0.0
    %396 = vmatprep.subr.mxu0 0.0
    %397 = vmatpush1.msra.mxu0 0.0
    %398 = vmatprep.subr.mxu0 0.0
    %399 = vmatpush1.msra.mxu0 0.0
    %400 = vmatprep.subr.mxu0 0.0
    %401 = vmatpush1.msra.mxu0 0.0
    %402 = vmatprep.subr.mxu0 0.0
    %403 = vmatpush1.msra.mxu0 0.0
    %404 = vmatprep.subr.mxu0 0.0
    %405 = vmatpush1.msra.mxu0 0.0
    %406 = vmatprep.subr.mxu0 0.0
    %407 = vmatpush1.msra.mxu0 0.0
    %408 = vmatprep.subr.mxu0 0.0
    %409 = vmatpush1.msra.mxu0 0.0
    %410 = vmatprep.subr.mxu0 0.0
    %411 = vmatpush1.msra.mxu0 0.0
    %412 = vmatprep.subr.mxu0 0.0
    %413 = vmatpush1.msra.mxu0 0.0
    %414 = vmatprep.subr.mxu0 0.0
    %415 = vmatpush1.msra.mxu0 0.0
    %416 = vmatprep.mubr.f32.mxu0 0.0
    %417 = vmatmul.mubr.f32.gmra.mrb[0].mxu0 %v350
    %v418 = vpop.f32.mrb[0].mxu0
    %v419 = vadd.f32 0.0, %v418
    %v420 = vpop.f32.mrb[0].mxu0
    %421 = vdwg.mxu0
    %v422 = vadd.f32 %v162, %v419
    %v423 = vtanh.pop %v422
    %v424 = vmul.f32 %v423, %v250
    %v425 = vsel %vm91, %v424, 0.0
    %426 = vadd.xlane.f32.xlu0 %v425
    %v427 = vpop.xlane.xlu0 %426
    %vm428 = vcmask 7168
    %v429 = vsel %vm428, %v255, %v341
    %vm430 = vcmask 15360
    %v431 = vsel %vm430, %v429, %v427
    %vm432 = vcmask 23552
    %v433 = vsel %vm432, %v431, -inf
    %434 = vmax.xlane.f32.xlu0 %v433
    %v435 = vpop.xlane.xlu0 %434
    %v436 = vsub.f32 %v431, %v435
    %v437 = vmul.f32 %v436, 1.442695
    %v438 = vpow.pop %v437
    %v439 = vsel %vm432, %v438, 0.0
    %440 = vadd.xlane.f32.xlu0 %v439
    %v441 = vpop.xlane.xlu0 %440
    %v442 = vrcp.pop %v441
    %v443 = vmul.f32 %v441, %v442
    %v444 = vsub.f32 2.0, %v443
    %v445 = vmul.f32 %v442, %v444
    %v446 = vmul.f32 %v438, %v445
    %447 = vst.msk [vmem:[%s6] sm:$0xff] %vm432, %v446
    %v448 = vld [vmem:[#allocation2] sm:$0xff]
    %450 = vset.pattern.permute.xlu0 0
    %451 = vperm.xlu0 %450, %v446
    %v452 = vpop.permute.xlu0 %451
    %v454 = vmul.f32 %v452, %v448
    %v455 = vld [vmem:[%s256] sm:$0xff]
    %456 = vset.pattern.permute.xlu0 1
    %457 = vperm.xlu0 %456, %v446
    %v458 = vpop.permute.xlu0 %457
    %v460 = vmul.f32 %v458, %v455
    %v461 = vadd.f32 %v454, %v460
    %v462 = vld [vmem:[%s342] sm:$0xff]
    %463 = vset.pattern.permute.xlu0 2
    %464 = vperm.xlu0 %463, %v446
    %v465 = vpop.permute.xlu0 %464
    %v467 = vmul.f32 %v465, %v462
    %v468 = vadd.f32 %v461, %v467
    %469 = vst.msk [vmem:[#allocation10] sm:$0xff] %vm91, %v468
    // Predicated region
    $region42: #{tpu_custom_call.1} parent=1 // pred_check
      _
    $region43: #{tpu_custom_call.1} parent=1 // pred_check_branch
      %471 = sbr.rel (0) target = $region45
    $region44: #{tpu_custom_call.1} parent=1 // pred_region
      _
    $region45: #{tpu_custom_call.1} parent=1 // pred_fallthru
      _
    // Predicated region
    $region46: #{tpu_custom_call.1} parent=1 // pred_check
      _
    $region47: #{tpu_custom_call.1} parent=1 // pred_check_branch
      %473 = sbr.rel (0) target = $region49
    $region48: #{tpu_custom_call.1} parent=1 // pred_region
      %s475 = ssub.s32 128, 128
      %476 = vsyncadd [#allocation4], %s475
      %s478 = sshll.u32 [#allocation10], 4
      %s479 = int_to_ptr.vmem [resolvable:$true] %s478
      %481 = dma.vmem_to_hbm [thread:$0]  %s479, 128, %s7, [#allocation4]
    $region49: #{tpu_custom_call.1} parent=1 // pred_fallthru
      _
    // Predicated region
    $region50: #{tpu_custom_call.1} parent=1 // pred_check
      _
    $region51: #{tpu_custom_call.1} parent=1 // pred_check_branch
      %483 = sbr.rel (0) target = $region53
    $region52: #{tpu_custom_call.1} parent=1 // pred_region
      _
    $region53: #{tpu_custom_call.1} parent=1 // pred_fallthru
      _
    // Predicated region
    $region54: #{tpu_custom_call.1} parent=1 // pred_check
      _
    $region55: #{tpu_custom_call.1} parent=1 // pred_check_branch
      %485 = sbr.rel (0) target = $region57
    $region56: #{tpu_custom_call.1} parent=1 // pred_region
      %486 = dma.done [#allocation4], 128
    $region57: #{tpu_custom_call.1} parent=1 // pred_fallthru
      _
    %487 = vsyncpa [#allocation3], 1
    %488 = vsyncpa [#allocation6], 1
    %489 = vsyncpa [#allocation9], 1
    %490 = vsyncpa [#allocation4], 1

</llo_original>
